<compile_context>
chip_gen: v5e
topology: v5e:2x2
jax: 0.10.0
libtpu: 0.0.40
codegen_flags: <defaults>
</compile_context>

<pallas_src>
import functools

import jax
import jax.numpy as jnp
from jax.experimental import pallas as pl
from jax.experimental.pallas import tpu as pltpu


def _round_up(x, m):
    return (x + m - 1) // m * m


def _mmd_kernel(meta_ref, u_ref, loss_ref, acc_ref, *,
                batch, w_m, sigma_base, num_groups, num_classes, kernel_type, eps):
    """Grid axis 0 iterates feature (D) tiles; it is a reduction ('arbitrary')."""
    step = pl.program_id(0)
    last = pl.num_programs(0) - 1

    @pl.when(step == 0)
    def _init():
        acc_ref[...] = jnp.zeros_like(acc_ref)
        loss_ref[0, 0] = 0.0

    # Fused gram accumulation:  acc += u_blk @ u_blk^T   with u = [teacher; student].
    u = u_ref[...]
    acc_ref[...] += jax.lax.dot_general(
        u, u, (((1,), (1,)), ((), ())), preferred_element_type=jnp.float32)

    @pl.when(step == last)
    def _finalize():
        b = batch
        n2 = 2 * b
        gram = acc_ref[...]                                        # (2B, 2B) f32

        # Row squared-norms == gram diagonal (no extra pass over the features).
        row_i = jax.lax.broadcasted_iota(jnp.int32, (n2, n2), 0)
        col_i = jax.lax.broadcasted_iota(jnp.int32, (n2, n2), 1)
        eye = (row_i == col_i).astype(jnp.float32)
        diag_col = jnp.sum(gram * eye, axis=1, keepdims=True)      # (2B, 1)
        diag_row = jnp.sum(gram * eye, axis=0, keepdims=True)      # (1, 2B)

        if kernel_type == "rbf":
            dist = jnp.maximum(diag_col + diag_row - 2.0 * gram, eps)   # (2B, 2B)
            # sigma from the full teacher-vs-student distance block (torch.no_grad pre-pass).
            # TODO(synk): if a VJP is ever added, stop_gradient sigma_avg to match no_grad().
            sigma_avg = jnp.mean(dist[:b, b:])
            inv = 1.0 / (2.0 * sigma_base * sigma_avg)
            kmat = jnp.exp(-dist * inv)
        else:  # 'poly': F.normalize folded into the gram via the diagonal norms.
            norm_col = jnp.maximum(jnp.sqrt(diag_col), 1e-12)
            norm_row = jnp.maximum(jnp.sqrt(diag_row), 1e-12)
            gn = gram / norm_col / norm_row
            kmat = gn * gn

        k_tt = kmat[:b, :b]
        k_ss = kmat[b:, b:]
        k_ts = kmat[:b, b:]

        # One-hot (class, class*group) masks, shape (C*G, B), built from iota only
        # (no integer div/mod):  row r = c*G + g  <=>  0 <= r - G*label < G.
        meta = meta_ref[...]                                       # (2, B) int32
        lab = meta[0:1, :]                                         # (1, B)
        grp = meta[1:2, :]                                         # (1, B)
        cg = num_classes * num_groups
        r_iota = jax.lax.broadcasted_iota(jnp.int32, (cg, b), 0)
        diff = r_iota - num_groups * lab                           # (CG, B)
        in_class = (diff >= 0) & (diff < num_groups)
        oh_t = in_class.astype(jnp.float32)                        # teacher rows of class c
        oh_s = (in_class & (diff == grp)).astype(jnp.float32)      # student rows of (c, g)

        nt = jnp.sum(oh_t, axis=1, keepdims=True)                  # (CG, 1)
        ns = jnp.sum(oh_s, axis=1, keepdims=True)                  # (CG, 1)

        def masked_sum(mask_l, kq, mask_r):
            rows = jax.lax.dot_general(mask_l, kq, (((1,), (0,)), ((), ())),
                                       preferred_element_type=jnp.float32)  # (CG, B)
            return jnp.sum(rows * mask_r, axis=1, keepdims=True)            # (CG, 1)

        sum_tt = masked_sum(oh_t, k_tt, oh_t)
        sum_ss = masked_sum(oh_s, k_ss, oh_s)
        sum_ts = masked_sum(oh_t, k_ts, oh_s)

        mean_tt = sum_tt / jnp.maximum(nt * nt, 1.0)
        mean_ss = sum_ss / jnp.maximum(ns * ns, 1.0)
        mean_ts = sum_ts / jnp.maximum(nt * ns, 1.0)

        valid = ((nt > 0.0) & (ns > 0.0)).astype(jnp.float32)      # reference 'continue'
        mmd = jnp.sum(valid * (mean_tt + mean_ss - 2.0 * mean_ts))
        loss_ref[0, 0] = 0.5 * w_m * mmd


def mmd_loss_pallas(f_s, f_t, groups, labels, *, w_m=1.0, sigma=1.0,
                    num_groups=2, num_classes=2, kernel="rbf",
                    block_k=2048, compute_dtype=jnp.bfloat16):
    b = f_s.shape[0]
    t = f_t.reshape(b, -1)                 # teacher (f.view(B, -1), same ordering as torch)
    s = f_s.reshape(b, -1)                 # student
    d = t.shape[1]

    # Teacher rows first, student rows second -> one fused gram u @ u^T per D-tile.
    u = jnp.concatenate([t, s], axis=0).astype(compute_dtype)      # (2B, D)

    tk = min(_round_up(int(block_k), 128), _round_up(d, 128))
    d_pad = _round_up(d, tk)
    if d_pad != d:
        u = jnp.pad(u, ((0, 0), (0, d_pad - d)))                   # zero-pad: grams unchanged
    nk = d_pad // tk

    meta = jnp.stack([labels.astype(jnp.int32), groups.astype(jnp.int32)], axis=0)  # (2, B)

    kern = functools.partial(
        _mmd_kernel, batch=b, w_m=float(w_m), sigma_base=float(sigma),
        num_groups=int(num_groups), num_classes=int(num_classes),
        kernel_type=kernel, eps=1e-12)

    itemsize = jnp.dtype(compute_dtype).itemsize
    acc_bytes = (2 * b) * (2 * b) * 4
    vmem_limit = int(
        2 * (2 * b * tk * itemsize + 2 * b * 4)    # double-buffered feature + meta blocks
        + 12 * acc_bytes                           # gram scratch + finalize temporaries
        + (4 << 20))                               # headroom
    # TODO(synk): on v7x, a 2-TensorCore core_map split of the D reduction (partial grams
    # combined via shared memory) would roughly double streaming throughput; single-core here.

    cost = pl.CostEstimate(
        flops=2 * (2 * b) ** 2 * d_pad + 6 * num_classes * num_groups * b * b,
        transcendentals=(2 * b) ** 2 if kernel == "rbf" else 0,
        bytes_accessed=u.size * itemsize + meta.size * 4 + 4,
    )

    out = pl.pallas_call(
        kern,
        out_shape=jax.ShapeDtypeStruct((1, 1), jnp.float32),
        grid_spec=pltpu.PrefetchScalarGridSpec(
            num_scalar_prefetch=0,
            grid=(nk,),
            in_specs=[
                pl.BlockSpec((2, b), lambda k: (0, 0)),            # labels / groups (tiny)
                pl.BlockSpec((2 * b, tk), lambda k: (0, k)),       # stacked feature tile
            ],
            out_specs=pl.BlockSpec((1, 1), lambda k: (0, 0),
                                   memory_space=pltpu.MemorySpace.SMEM),
            scratch_shapes=[pltpu.VMEM((2 * b, 2 * b), jnp.float32)],
        ),
        compiler_params=pltpu.CompilerParams(
            dimension_semantics=("arbitrary",),
            vmem_limit_bytes=vmem_limit,
        ),
        cost_estimate=cost,
    )(meta, u)
    return out[0, 0]


def mmd_loss_ref(f_s, f_t, groups, labels, *, w_m=1.0, sigma=1.0,
                 num_groups=2, num_classes=2, kernel="rbf"):
    # Pure-JAX mirror of the PyTorch forward (masked-mean formulation), for sanity checks.
    b = f_s.shape[0]
    s = f_s.reshape(b, -1).astype(jnp.float32)
    t = f_t.reshape(b, -1).astype(jnp.float32)
    eps = 1e-12
    hi = jax.lax.Precision.HIGHEST
    if kernel == "poly":
        t = t / jnp.maximum(jnp.linalg.norm(t, axis=1, keepdims=True), 1e-12)
        s = s / jnp.maximum(jnp.linalg.norm(s, axis=1, keepdims=True), 1e-12)

    def dist(a, c):
        a2 = jnp.sum(a * a, axis=1, keepdims=True)
        c2 = jnp.sum(c * c, axis=1, keepdims=True)
        return jnp.maximum(a2 + c2.T - 2.0 * jnp.matmul(a, c.T, precision=hi), eps)

    if kernel == "rbf":
        d_ts, d_tt, d_ss = dist(t, s), dist(t, t), dist(s, s)
        sigma_avg = jnp.mean(d_ts)
        inv = 1.0 / (2.0 * sigma * sigma_avg)
        k_ts, k_tt, k_ss = jnp.exp(-d_ts * inv), jnp.exp(-d_tt * inv), jnp.exp(-d_ss * inv)
    else:
        k_ts = jnp.matmul(t, s.T, precision=hi) ** 2
        k_tt = jnp.matmul(t, t.T, precision=hi) ** 2
        k_ss = jnp.matmul(s, s.T, precision=hi) ** 2

    mmd = jnp.float32(0.0)
    for c in range(num_classes):
        mt = (labels == c).astype(jnp.float32)
        nt = jnp.sum(mt)
        for g in range(num_groups):
            ms = mt * (groups == g).astype(jnp.float32)
            ns = jnp.sum(ms)
            m_tt = jnp.sum(k_tt * mt[:, None] * mt[None, :]) / jnp.maximum(nt * nt, 1.0)
            m_ss = jnp.sum(k_ss * ms[:, None] * ms[None, :]) / jnp.maximum(ns * ns, 1.0)
            m_ts = jnp.sum(k_ts * mt[:, None] * ms[None, :]) / jnp.maximum(nt * ns, 1.0)
            mmd = mmd + jnp.where((nt > 0) & (ns > 0), m_tt + m_ss - 2.0 * m_ts, 0.0)
    return 0.5 * w_m * mmd


if __name__ == "__main__":
    key = jax.random.PRNGKey(0)
    k1, k2, k3, k4 = jax.random.split(key, 4)

    B, C, H, W = 8, 4, 16, 16          # flattened feature dim D = 1024
    num_classes, num_groups = 2, 2
    w_m, sigma = 1.0, 1.0

    f_s = jax.random.normal(k1, (B, C, H, W), jnp.float32)   # student features (NCHW)
    f_t = jax.random.normal(k2, (B, C, H, W), jnp.float32)   # teacher features (NCHW)
    labels = jax.random.randint(k3, (B,), 0, num_classes, jnp.int32)
    groups = jax.random.randint(k4, (B,), 0, num_groups, jnp.int32)

    # block_k=256 -> 4 feature tiles, exercising the pipelined gram accumulation.
    configs = [("rbf", jnp.bfloat16), ("rbf", jnp.float32), ("poly", jnp.bfloat16)]
    for kernel_name, cdtype in configs:
        loss = jax.block_until_ready(mmd_loss_pallas(
            f_s, f_t, groups, labels, w_m=w_m, sigma=sigma,
            num_groups=num_groups, num_classes=num_classes, kernel=kernel_name,
            block_k=256, compute_dtype=cdtype))
        ref = jax.block_until_ready(mmd_loss_ref(
            f_s, f_t, groups, labels, w_m=w_m, sigma=sigma,
            num_groups=num_groups, num_classes=num_classes, kernel=kernel_name))
        assert jnp.isfinite(loss), (kernel_name, str(cdtype), float(loss))
        assert jnp.allclose(loss, ref, rtol=2e-2, atol=1e-3), (
            kernel_name, str(cdtype), float(loss), float(ref))

    print("KERNEL_OK")
</pallas_src>

<mosaic_0001>
module attributes {stable_mosaic.version = 11 : i64} {
  func.func @_mmd_kernel(%arg0: i32, %arg1: memref<2x8xi32, #tpu.memory_space<vmem>>, %arg2: memref<16x256xbf16, #tpu.memory_space<vmem>>, %arg3: memref<1x1xf32, #tpu.memory_space<smem>>, %arg4: memref<16x16xf32, #tpu.memory_space<vmem>>) attributes {dimension_semantics = [#tpu.dimension_semantics<arbitrary>], iteration_bounds = array<i64: 4>, scalar_prefetch = 0 : i64, scratch_operands = 1 : i64, tpu.core_type = #tpu.core_type<tc>, window_params = [{pipeline_mode = #tpu.pipeline_mode<synchronous>, transform_indices = @transform_0, window_bounds = array<i64: 2, 8>}, {transform_indices = @transform_1, window_bounds = array<i64: 16, 256>}, {transform_indices = @transform_2, window_bounds = array<i64: 1, 1>}]} {
    %c0_i32 = arith.constant 0 : i32
    %0 = arith.cmpi eq, %arg0, %c0_i32 : i32
    %1 = arith.extui %0 : i1 to i32
    %c0_i32_0 = arith.constant 0 : i32
    %2 = arith.cmpi ne, %1, %c0_i32_0 : i32
    scf.if %2 {
      %cst_7 = arith.constant 0.000000e+00 : f32
      %11 = vector.broadcast %cst_7 : f32 to vector<16x16xf32>
      %c0_8 = arith.constant 0 : index
      %c0_9 = arith.constant 0 : index
      %12 = vector.load %arg4[%c0_8, %c0_9] : memref<16x16xf32, #tpu.memory_space<vmem>>, vector<16x16xf32>
      tpu.vector_store %arg4[%c0_8, %c0_9], %11 {strides = array<i32>} : memref<16x16xf32, #tpu.memory_space<vmem>>, vector<16x16xf32>,
      %cst_10 = arith.constant 0.000000e+00 : f32
      %c0_11 = arith.constant 0 : index
      %c0_12 = arith.constant 0 : index
      %13 = memref.load %arg3[%c0_11, %c0_12] : memref<1x1xf32, #tpu.memory_space<smem>>
      memref.store %cst_10, %arg3[%c0_11, %c0_12] : memref<1x1xf32, #tpu.memory_space<smem>>
    } else {
    }
    %c0 = arith.constant 0 : index
    %c0_1 = arith.constant 0 : index
    %3 = vector.load %arg2[%c0, %c0_1] : memref<16x256xbf16, #tpu.memory_space<vmem>>, vector<16x256xbf16>
    %c0_2 = arith.constant 0 : index
    %c0_3 = arith.constant 0 : index
    %4 = vector.load %arg4[%c0_2, %c0_3] : memref<16x16xf32, #tpu.memory_space<vmem>>, vector<16x16xf32>
    %cst = arith.constant dense<0.000000e+00> : vector<16x16xf32>
    %5 = tpu.matmul %3, %3, %cst {dimension_numbers = #tpu.dot_dimension_numbers<[1], [1], [0], [0], [0, 0, 1, 0], [], []>} : vector<16x256xbf16>, vector<16x256xbf16>, vector<16x16xf32> -> vector<16x16xf32>
    %6 = arith.addf %4, %5 : vector<16x16xf32>
    %c0_4 = arith.constant 0 : index
    %c0_5 = arith.constant 0 : index
    %7 = vector.load %arg4[%c0_4, %c0_5] : memref<16x16xf32, #tpu.memory_space<vmem>>, vector<16x16xf32>
    tpu.vector_store %arg4[%c0_4, %c0_5], %6 {strides = array<i32>} : memref<16x16xf32, #tpu.memory_space<vmem>>, vector<16x16xf32>,
    %c3_i32 = arith.constant 3 : i32
    %8 = arith.cmpi eq, %arg0, %c3_i32 : i32
    %9 = arith.extui %8 : i1 to i32
    %c0_i32_6 = arith.constant 0 : i32
    %10 = arith.cmpi ne, %9, %c0_i32_6 : i32
    scf.if %10 {
      %c0_7 = arith.constant 0 : index
      %c0_8 = arith.constant 0 : index
      %11 = vector.load %arg4[%c0_7, %c0_8] : memref<16x16xf32, #tpu.memory_space<vmem>>, vector<16x16xf32>
      %12 = tpu.iota {dimensions = array<i32: 0>} : vector<16x16xi32>
      %13 = tpu.iota {dimensions = array<i32: 1>} : vector<16x16xi32>
      %14 = arith.cmpi eq, %12, %13 : vector<16x16xi32>
      %15 = arith.extui %14 : vector<16x16xi1> to vector<16x16xi32>
      %16 = arith.sitofp %15 : vector<16x16xi32> to vector<16x16xf32>
      %17 = arith.mulf %11, %16 : vector<16x16xf32>
      %cst_9 = arith.constant dense<0.000000e+00> : vector<16xf32>
      %18 = vector.multi_reduction <add>, %17, %cst_9 [1] : vector<16x16xf32> to vector<16xf32>
      %19 = vector.shape_cast %18 : vector<16xf32> to vector<16x1xf32>
      %20 = arith.mulf %11, %16 : vector<16x16xf32>
      %cst_10 = arith.constant dense<0.000000e+00> : vector<16xf32>
      %21 = vector.multi_reduction <add>, %20, %cst_10 [0] : vector<16x16xf32> to vector<16xf32>
      %22 = vector.shape_cast %21 : vector<16xf32> to vector<1x16xf32>
      %23 = vector.broadcast %19 : vector<16x1xf32> to vector<16x16xf32>
      %24 = vector.broadcast %22 : vector<1x16xf32> to vector<16x16xf32>
      %25 = arith.addf %23, %24 : vector<16x16xf32>
      %cst_11 = arith.constant 2.000000e+00 : f32
      %26 = vector.broadcast %cst_11 : f32 to vector<16x16xf32>
      %27 = arith.mulf %26, %11 : vector<16x16xf32>
      %28 = arith.subf %25, %27 : vector<16x16xf32>
      %cst_12 = arith.constant 9.99999996E-13 : f32
      %29 = vector.broadcast %cst_12 : f32 to vector<16x16xf32>
      %30 = arith.maximumf %28, %29 : vector<16x16xf32>
      %31 = vector.extract_strided_slice %30 {offsets = [0, 8], sizes = [8, 8], strides = [1, 1]} : vector<16x16xf32> to vector<8x8xf32>
      %32 = vector.shape_cast %31 : vector<8x8xf32> to vector<1x8x8xf32>
      %cst_13 = arith.constant dense<0.000000e+00> : vector<1xf32>
      %33 = vector.multi_reduction <add>, %32, %cst_13 [1, 2] : vector<1x8x8xf32> to vector<1xf32>
      %34 = vector.shape_cast %33 : vector<1xf32> to vector<1x1x1xf32>
      %35 = vector.extract %34[0, 0, 0] : f32 from vector<1x1x1xf32>
      %cst_14 = arith.constant 6.400000e+01 : f32
      %36 = arith.divf %35, %cst_14 : f32
      %cst_15 = arith.constant 2.000000e+00 : f32
      %37 = arith.mulf %cst_15, %36 : f32
      %cst_16 = arith.constant 1.000000e+00 : f32
      %38 = arith.divf %cst_16, %37 : f32
      %cst_17 = arith.constant 0.000000e+00 : f32
      %39 = vector.broadcast %cst_17 : f32 to vector<16x16xf32>
      %40 = arith.subf %39, %30 : vector<16x16xf32>
      %41 = vector.broadcast %38 : f32 to vector<16x16xf32>
      %42 = arith.mulf %40, %41 : vector<16x16xf32>
      %43 = math.exp %42 : vector<16x16xf32>
      %44 = vector.extract_strided_slice %43 {offsets = [0, 0], sizes = [8, 8], strides = [1, 1]} : vector<16x16xf32> to vector<8x8xf32>
      %45 = vector.extract_strided_slice %43 {offsets = [8, 8], sizes = [8, 8], strides = [1, 1]} : vector<16x16xf32> to vector<8x8xf32>
      %46 = vector.extract_strided_slice %43 {offsets = [0, 8], sizes = [8, 8], strides = [1, 1]} : vector<16x16xf32> to vector<8x8xf32>
      %c0_18 = arith.constant 0 : index
      %c0_19 = arith.constant 0 : index
      %47 = vector.load %arg1[%c0_18, %c0_19] : memref<2x8xi32, #tpu.memory_space<vmem>>, vector<2x8xi32>
      %48 = vector.extract_strided_slice %47 {offsets = [0, 0], sizes = [1, 8], strides = [1, 1]} : vector<2x8xi32> to vector<1x8xi32>
      %49 = vector.extract_strided_slice %47 {offsets = [1, 0], sizes = [1, 8], strides = [1, 1]} : vector<2x8xi32> to vector<1x8xi32>
      %50 = tpu.iota {dimensions = array<i32: 0>} : vector<4x8xi32>
      %c2_i32 = arith.constant 2 : i32
      %51 = vector.broadcast %c2_i32 : i32 to vector<1x8xi32>
      %52 = arith.muli %51, %48 : vector<1x8xi32>
      %53 = vector.broadcast %52 : vector<1x8xi32> to vector<4x8xi32>
      %54 = arith.subi %50, %53 : vector<4x8xi32>
      %c0_i32_20 = arith.constant 0 : i32
      %55 = vector.broadcast %c0_i32_20 : i32 to vector<4x8xi32>
      %56 = arith.cmpi sge, %54, %55 : vector<4x8xi32>
      %c2_i32_21 = arith.constant 2 : i32
      %57 = vector.broadcast %c2_i32_21 : i32 to vector<4x8xi32>
      %58 = arith.cmpi slt, %54, %57 : vector<4x8xi32>
      %59 = arith.andi %56, %58 : vector<4x8xi1>
      %60 = arith.extui %59 : vector<4x8xi1> to vector<4x8xi32>
      %61 = arith.sitofp %60 : vector<4x8xi32> to vector<4x8xf32>
      %62 = vector.broadcast %49 : vector<1x8xi32> to vector<4x8xi32>
      %63 = arith.cmpi eq, %54, %62 : vector<4x8xi32>
      %64 = arith.andi %59, %63 : vector<4x8xi1>
      %65 = arith.extui %64 : vector<4x8xi1> to vector<4x8xi32>
      %66 = arith.sitofp %65 : vector<4x8xi32> to vector<4x8xf32>
      %cst_22 = arith.constant dense<0.000000e+00> : vector<4xf32>
      %67 = vector.multi_reduction <add>, %61, %cst_22 [1] : vector<4x8xf32> to vector<4xf32>
      %68 = vector.shape_cast %67 : vector<4xf32> to vector<4x1xf32>
      %cst_23 = arith.constant dense<0.000000e+00> : vector<4xf32>
      %69 = vector.multi_reduction <add>, %66, %cst_23 [1] : vector<4x8xf32> to vector<4xf32>
      %70 = vector.shape_cast %69 : vector<4xf32> to vector<4x1xf32>
      %cst_24 = arith.constant dense<0.000000e+00> : vector<4x8xf32>
      %71 = tpu.matmul %61, %44, %cst_24 {dimension_numbers = #tpu.dot_dimension_numbers<[1], [0], [0], [1], [0, 0, 1, 1], [], []>} : vector<4x8xf32>, vector<8x8xf32>, vector<4x8xf32> -> vector<4x8xf32>
      %72 = arith.mulf %71, %61 : vector<4x8xf32>
      %cst_25 = arith.constant dense<0.000000e+00> : vector<4xf32>
      %73 = vector.multi_reduction <add>, %72, %cst_25 [1] : vector<4x8xf32> to vector<4xf32>
      %74 = vector.shape_cast %73 : vector<4xf32> to vector<4x1xf32>
      %cst_26 = arith.constant dense<0.000000e+00> : vector<4x8xf32>
      %75 = tpu.matmul %66, %45, %cst_26 {dimension_numbers = #tpu.dot_dimension_numbers<[1], [0], [0], [1], [0, 0, 1, 1], [], []>} : vector<4x8xf32>, vector<8x8xf32>, vector<4x8xf32> -> vector<4x8xf32>
      %76 = arith.mulf %75, %66 : vector<4x8xf32>
      %cst_27 = arith.constant dense<0.000000e+00> : vector<4xf32>
      %77 = vector.multi_reduction <add>, %76, %cst_27 [1] : vector<4x8xf32> to vector<4xf32>
      %78 = vector.shape_cast %77 : vector<4xf32> to vector<4x1xf32>
      %cst_28 = arith.constant dense<0.000000e+00> : vector<4x8xf32>
      %79 = tpu.matmul %61, %46, %cst_28 {dimension_numbers = #tpu.dot_dimension_numbers<[1], [0], [0], [1], [0, 0, 1, 1], [], []>} : vector<4x8xf32>, vector<8x8xf32>, vector<4x8xf32> -> vector<4x8xf32>
      %80 = arith.mulf %79, %66 : vector<4x8xf32>
      %cst_29 = arith.constant dense<0.000000e+00> : vector<4xf32>
      %81 = vector.multi_reduction <add>, %80, %cst_29 [1] : vector<4x8xf32> to vector<4xf32>
      %82 = vector.shape_cast %81 : vector<4xf32> to vector<4x1xf32>
      %83 = arith.mulf %68, %68 : vector<4x1xf32>
      %cst_30 = arith.constant 1.000000e+00 : f32
      %84 = vector.broadcast %cst_30 : f32 to vector<4x1xf32>
      %85 = arith.maximumf %83, %84 : vector<4x1xf32>
      %86 = arith.divf %74, %85 : vector<4x1xf32>
      %87 = arith.mulf %70, %70 : vector<4x1xf32>
      %cst_31 = arith.constant 1.000000e+00 : f32
      %88 = vector.broadcast %cst_31 : f32 to vector<4x1xf32>
      %89 = arith.maximumf %87, %88 : vector<4x1xf32>
      %90 = arith.divf %78, %89 : vector<4x1xf32>
      %91 = arith.mulf %68, %70 : vector<4x1xf32>
      %cst_32 = arith.constant 1.000000e+00 : f32
      %92 = vector.broadcast %cst_32 : f32 to vector<4x1xf32>
      %93 = arith.maximumf %91, %92 : vector<4x1xf32>
      %94 = arith.divf %82, %93 : vector<4x1xf32>
      %cst_33 = arith.constant 0.000000e+00 : f32
      %95 = vector.broadcast %cst_33 : f32 to vector<4x1xf32>
      %96 = arith.cmpf ogt, %68, %95 : vector<4x1xf32>
      %cst_34 = arith.constant 0.000000e+00 : f32
      %97 = vector.broadcast %cst_34 : f32 to vector<4x1xf32>
      %98 = arith.cmpf ogt, %70, %97 : vector<4x1xf32>
      %99 = arith.andi %96, %98 : vector<4x1xi1>
      %100 = arith.extui %99 : vector<4x1xi1> to vector<4x1xi32>
      %101 = arith.sitofp %100 : vector<4x1xi32> to vector<4x1xf32>
      %102 = arith.addf %86, %90 : vector<4x1xf32>
      %cst_35 = arith.constant 2.000000e+00 : f32
      %103 = vector.broadcast %cst_35 : f32 to vector<4x1xf32>
      %104 = arith.mulf %103, %94 : vector<4x1xf32>
      %105 = arith.subf %102, %104 : vector<4x1xf32>
      %106 = arith.mulf %101, %105 : vector<4x1xf32>
      %107 = vector.shape_cast %106 : vector<4x1xf32> to vector<1x4x1xf32>
      %cst_36 = arith.constant dense<0.000000e+00> : vector<1xf32>
      %108 = vector.multi_reduction <add>, %107, %cst_36 [1, 2] : vector<1x4x1xf32> to vector<1xf32>
      %109 = vector.shape_cast %108 : vector<1xf32> to vector<1x1x1xf32>
      %110 = vector.extract %109[0, 0, 0] : f32 from vector<1x1x1xf32>
      %cst_37 = arith.constant 5.000000e-01 : f32
      %111 = arith.mulf %cst_37, %110 : f32
      %c0_38 = arith.constant 0 : index
      %c0_39 = arith.constant 0 : index
      %112 = memref.load %arg3[%c0_38, %c0_39] : memref<1x1xf32, #tpu.memory_space<smem>>
      memref.store %111, %arg3[%c0_38, %c0_39] : memref<1x1xf32, #tpu.memory_space<smem>>
    } else {
    }
    return
  }
  func.func @transform_0(%arg0: i32) -> (i32, i32) {
    %c0_i32 = arith.constant 0 : i32
    %c0_i32_0 = arith.constant 0 : i32
    %c0_i32_1 = arith.constant 0 : i32
    return %c0_i32, %c0_i32_0 : i32, i32
  }
  func.func @transform_1(%arg0: i32) -> (i32, i32) {
    %c0_i32 = arith.constant 0 : i32
    %c0_i32_0 = arith.constant 0 : i32
    return %c0_i32, %arg0 : i32, i32
  }
  func.func @transform_2(%arg0: i32) -> (i32, i32) {
    %c0_i32 = arith.constant 0 : i32
    %c0_i32_0 = arith.constant 0 : i32
    %c0_i32_1 = arith.constant 0 : i32
    return %c0_i32, %c0_i32_0 : i32, i32
  }
}

</mosaic_0001>

<llo_original>
// kernel: tpu_custom_call.1
$region0: #{tpu_custom_call.1}
  #allocation0 [shape = 'u32[]', space=smem, size = 0x4, offset = 0x4, fixed_abs, tag = 'smem constant byte address 0x4 - core index']
  #allocation1 [shape = 'u32[72,128]{1,0:T(1,128)}', space=vmem, size = 0x9000, scoped, tag = 'internal scratch']
  #allocation2 [shape = 'f32[16,16]{1,0:T(8,128)}', space=vmem, size = 0x2000, scoped, tag = 'scratch operand']
  %s0 = inlined_call_operand.hbm [shape: s32[2,8], index: 0, kind: input, shape index: {}]
  %s1 = inlined_call_operand.hbm [shape: bf16[16,1024], index: 1, kind: input, shape index: {}]
  %s2 = inlined_call_operand.hbm [shape: f32[1,1], index: 2, kind: output, shape index: {}]
  %s3 = sld [smem:[#allocation0]]
  $region57: #{tpu_custom_call.1} parent=0
    _
  %s5 = ssub.s32 1, %s3
  %s6 = scalar_select 0, %s5, %s3
  $region1: #{tpu_custom_call.1} parent=0
    #allocation3 [shape = 'u8[1024]{0}', space=vmem, size = 0x400, scoped, tag = 'input window, operand 0, single buffered']
    #allocation4 [shape = 's32[2]{0}', space=sflag, size = 0x8, scoped, tag = 'scoped memory for tpu_custom_call.1']
    #allocation5 [shape = 's32[2]{0}', space=sflag, size = 0x8, scoped, tag = 'scoped memory for tpu_custom_call.1']
    #allocation6 [shape = 'u8[16384]{0}', space=vmem, size = 0x4000, scoped, tag = 'input window, operand 1']
    #allocation7 [shape = 's32[2]{0}', space=sflag, size = 0x8, scoped, tag = 'scoped memory for tpu_custom_call.1']
    #allocation8 [shape = 'u8[512]{0}', space=smem, size = 0x200, scoped, tag = 'output window, operand 0, single buffered']
    %7 = vsyncpa [#allocation4], 0
    %8 = vsyncpa [#allocation7], 0
    %s9 = scalar_lea.sflag [#allocation7], 1
    %10 = vsyncpa %s9, 0
    %11 = vsyncpa [#allocation5], 0
    loop: start=0, step=1, limit=6
    $region2: #{tpu_custom_call.1} parent=1 // loop_pre_header
      _
    $region3: #{tpu_custom_call.1} parent=1 // loop_header
      %s13 = sphi 0, %s17
      %p14 = scmp.ge.s32.totalorder %s13, 6
      %s21 = sphi 0, %s21
      %s23 = sphi 0, %s21
      %s24 = sphi 0, %s23
      %s38 = sphi 0, %s24
      %s44 = sphi 0, %s46
      %s47 = sphi 0, %s44
      %s48 = sphi 0, %s47
      %s64 = sphi 0, %s48
      %s68 = sphi 0, %s68
      %s70 = sphi 0, %s68
      %s71 = sphi 0, %s70
      %s85 = sphi 0, %s71
    $region4: #{tpu_custom_call.1} parent=1 // loop_header_branch
      %16 = sbr.rel (%p14) target = $region8
    $region5: #{tpu_custom_call.1} parent=1 // loop_body
      %s18 = ssub.s32 %s13, 1
      %s19 = ssub.s32 %s13, 2
      %s20 = sadd.s32 %s13, 1
      %s22 = sadd.s32 %s21, 1
      %p25 = scmp.eq.s32.totalorder %s13, 3
      %p26 = scmp.ne.s32.totalorder %s21, %s23
      %p27 = scmp.eq.s32.totalorder %s13, 0
      %p28 = por %p26, %p27
      %p29 = scmp.ne.s32.totalorder %s21, %s23
      %p30 = scmp.eq.s32.totalorder %s18, 3
      %p31 = por %p29, %p30
      %p32 = scmp.ne.s32.totalorder %s23, %s24
      %p33 = scmp.eq.s32.totalorder %s18, 0
      %p34 = por %p32, %p33
      %p35 = scmp.ne.s32.totalorder %s23, %s24
      %p36 = scmp.eq.s32.totalorder %s19, 3
      %p37 = por %p35, %p36
      %p39 = scmp.ne.s32.totalorder %s24, %s38
      %p40 = scmp.eq.s32.totalorder %s19, 0
      %p41 = por %p39, %p40
      %s42 = ssub.s32 %s13, %s20
      %p43 = scmp.eq.s32.totalorder %s42, 0
      %s45 = sadd.s32 %s44, 1
      %s46 = scalar_select %p43, %s44, %s45
      %p49 = pneg %p43
      %p50 = scmp.eq.s32.totalorder %s13, 3
      %p51 = por %p49, %p50
      %p52 = scmp.ne.s32.totalorder %s44, %s47
      %p53 = scmp.eq.s32.totalorder %s13, 0
      %p54 = por %p52, %p53
      %p55 = scmp.ne.s32.totalorder %s44, %s47
      %p56 = scmp.eq.s32.totalorder %s18, 3
      %p57 = por %p55, %p56
      %p58 = scmp.ne.s32.totalorder %s47, %s48
      %p59 = scmp.eq.s32.totalorder %s18, 0
      %p60 = por %p58, %p59
      %p61 = scmp.ne.s32.totalorder %s47, %s48
      %p62 = scmp.eq.s32.totalorder %s19, 3
      %p63 = por %p61, %p62
      %p65 = scmp.ne.s32.totalorder %s48, %s64
      %p66 = scmp.eq.s32.totalorder %s19, 0
      %p67 = por %p65, %p66
      %s69 = sadd.s32 %s68, 1
      %p72 = scmp.eq.s32.totalorder %s13, 3
      %p73 = scmp.ne.s32.totalorder %s68, %s70
      %p74 = scmp.eq.s32.totalorder %s13, 0
      %p75 = por %p73, %p74
      %p76 = scmp.ne.s32.totalorder %s68, %s70
      %p77 = scmp.eq.s32.totalorder %s18, 3
      %p78 = por %p76, %p77
      %p79 = scmp.ne.s32.totalorder %s70, %s71
      %p80 = scmp.eq.s32.totalorder %s18, 0
      %p81 = por %p79, %p80
      %p82 = scmp.ne.s32.totalorder %s70, %s71
      %p83 = scmp.eq.s32.totalorder %s19, 3
      %p84 = por %p82, %p83
      %p86 = scmp.ne.s32.totalorder %s71, %s85
      %p87 = scmp.eq.s32.totalorder %s19, 0
      %p88 = por %p86, %p87
      %p89 = scmp.le.s32.totalorder 1, %s13
      %p90 = scmp.lt.s32.totalorder %s13, 5
      %p91 = pnand %p89, %p90
      %p92 = pneg %p91
      // Predicated region
      $region9: #{tpu_custom_call.1} parent=5 // pred_check
        _
      $region10: #{tpu_custom_call.1} parent=5 // pred_check_branch
        %94 = sbr.rel (%p91) target = $region12
      $region11: #{tpu_custom_call.1} parent=5 // pred_region
        %s95 = ssub.s32 %s13, 1
        // Predicated region
        $region13: #{tpu_custom_call.1} parent=11 // pred_check
          %p96 = pneg %p34
        $region14: #{tpu_custom_call.1} parent=11 // pred_check_branch
          %98 = sbr.rel (%p96) target = $region16
        $region15: #{tpu_custom_call.1} parent=11 // pred_region
          %100 = vsyncadd [#allocation4], 0
          %s102 = sshll.u32 %s0, 4
          %s103 = int_to_ptr.hbm [resolvable:$true] %s102
          %s104 = sshll.u32 [#allocation3], 4
          %s105 = int_to_ptr.vmem [resolvable:$true] %s104
          %107 = dma.hbm_to_vmem [thread:$0]  %s103, 32, %s105, [#allocation4]
        $region16: #{tpu_custom_call.1} parent=11 // pred_fallthru
          _
      $region12: #{tpu_custom_call.1} parent=5 // pred_fallthru
        _
      %p108 = scmp.lt.s32.totalorder %s13, 4
      // Predicated region
      $region17: #{tpu_custom_call.1} parent=5 // pred_check
        %p109 = pneg %p108
      $region18: #{tpu_custom_call.1} parent=5 // pred_check_branch
        %111 = sbr.rel (%p109) target = $region20
      $region19: #{tpu_custom_call.1} parent=5 // pred_region
        // Predicated region
        $region21: #{tpu_custom_call.1} parent=19 // pred_check
          %p112 = pneg %p54
        $region22: #{tpu_custom_call.1} parent=19 // pred_check_branch
          %114 = sbr.rel (%p112) target = $region24
        $region23: #{tpu_custom_call.1} parent=19 // pred_region
          %s115 = sand.u32 %s44, 1
          %s116 = scalar_lea.sflag [#allocation7], %s115
          %s117 = sand.u32 %s44, 1
          %s118 = smul.addr %s117, 16
          %s119 = scalar_lea.vmem [#allocation6], %s118
          %s120 = smul.u32 2, %s13
          %122 = vsyncadd %s116, 0
          %s123 = smul.addr %s120, 4
          %s124 = scalar_lea.hbm %s1, %s123
          %s125 = sshll.u32 %s124, 4
          %s126 = int_to_ptr.hbm [resolvable:$true] %s125
          %s127 = sshll.u32 %s119, 4
          %s128 = int_to_ptr.vmem [resolvable:$true] %s127
          %133 = dma.hbm_to_vmem [thread:$0]  %s126, 256, %s128, %s116, 512, 128, 8
        $region24: #{tpu_custom_call.1} parent=19 // pred_fallthru
          _
      $region20: #{tpu_custom_call.1} parent=5 // pred_fallthru
        _
      %p134 = scmp.le.s32.totalorder 1, %s13
      %p135 = scmp.lt.s32.totalorder %s13, 5
      %p136 = pnand %p134, %p135
      %p137 = pneg %p136
      // Predicated region
      $region25: #{tpu_custom_call.1} parent=5 // pred_check
        _
      $region26: #{tpu_custom_call.1} parent=5 // pred_check_branch
        %139 = sbr.rel (%p136) target = $region28
      $region27: #{tpu_custom_call.1} parent=5 // pred_region
        %s140 = ssub.s32 %s13, 1
        // Predicated region
        $region29: #{tpu_custom_call.1} parent=27 // pred_check
          %p141 = pneg %p34
        $region30: #{tpu_custom_call.1} parent=27 // pred_check_branch
          %143 = sbr.rel (%p141) target = $region32
        $region31: #{tpu_custom_call.1} parent=27 // pred_region
          %145 = dma.done [#allocation4], 32
        $region32: #{tpu_custom_call.1} parent=27 // pred_fallthru
          _
        %s146 = sand.u32 %s47, 1
        %s147 = scalar_lea.sflag [#allocation7], %s146
        %s148 = sand.u32 %s47, 1
        %s149 = smul.addr %s148, 16
        %s150 = scalar_lea.vmem [#allocation6], %s149
        // Predicated region
        $region33: #{tpu_custom_call.1} parent=27 // pred_check
          %p151 = pneg %p60
        $region34: #{tpu_custom_call.1} parent=27 // pred_check_branch
          %153 = sbr.rel (%p151) target = $region36
        $region35: #{tpu_custom_call.1} parent=27 // pred_region
          %155 = dma.done %s147, 256
        $region36: #{tpu_custom_call.1} parent=27 // pred_fallthru
          _
        %p156 = pneg %p34
        %p157 = pneg %p31
        %s158 = sand.u32 %s47, 1
        %s159 = scalar_lea.sflag [#allocation7], %s158
        %s160 = sand.u32 %s47, 1
        %s161 = smul.addr %s160, 16
        %s162 = scalar_lea.vmem [#allocation6], %s161
        %p163 = pneg %p60
        %p164 = pneg %p57
        %p165 = pneg %p81
        %p166 = pneg %p78
        %s167 = smul.u32 2, %s18
        %p169 = scmp.eq.s32.totalorder %s18, 0
        // Predicated region
        $region37: #{tpu_custom_call.1} parent=27 // pred_check
          %p170 = pneg %p169
        $region38: #{tpu_custom_call.1} parent=27 // pred_check_branch
          %172 = sbr.rel (%p170) target = $region40
        $region39: #{tpu_custom_call.1} parent=27 // pred_region
          %vm173 = vcmask 130048
          %174 = vst.msk [vmem:[#allocation2] sm:$0xff] %vm173, 0.0
          %175 = vst.msk [vmem:[#allocation2 + $0x8] sm:$0xff] %vm173, 0.0
          %s176 = scalar_lea.smem [#allocation8], 0
          %177 = sst [smem:[%s176]] 0.0
        $region40: #{tpu_custom_call.1} parent=27 // pred_fallthru
          _
        %v178 = vld [vmem:[%s150] sm:$0xff]
        %v179 = vld [vmem:[%s150 + $0x8] sm:$0xff]
        %v180 = vld [vmem:[#allocation2] sm:$0xff]
        %v181 = vld [vmem:[#allocation2 + $0x8] sm:$0xff]
        %v184 = vunpack.c.l.b16 %v178
        %v185 = vunpack.c.h.b16 %v178
        %v186 = vunpack.c.l.b16 %v179
        %v187 = vunpack.c.h.b16 %v179
        %v188 = vpack.c.b16 %v186, %v184
        %v189 = vpack.c.b16 %v187, %v185
        %192 = vmatpush.bf16.xpose.msra.mxu0 0
        %193 = vmatpush.bf16.xpose.msra.mxu0 0
        %194 = vmatpush.bf16.xpose.msra.mxu0 0
        %195 = vmatpush.bf16.xpose.msra.mxu0 0
        %196 = vmatpush.bf16.xpose.msra.mxu0 0
        %197 = vmatpush.bf16.xpose.msra.mxu0 0
        %198 = vmatpush.bf16.xpose.msra.mxu0 0
        %199 = vmatpush.bf16.xpose.msra.mxu0 %v188
        %200 = vmatmul.bf16.gmra.mxu0 %v188
        %v201 = vpop.f32.mrf.mxu0
        %v202 = vadd.f32 0.0, %v201
        %v203 = vpop.f32.mrf.mxu0
        %v204 = vadd.f32 0.0, %v203
        %205 = vdwg.mxu0
        %206 = vmatpush.bf16.xpose.msra.mxu0 0
        %207 = vmatpush.bf16.xpose.msra.mxu0 0
        %208 = vmatpush.bf16.xpose.msra.mxu0 0
        %209 = vmatpush.bf16.xpose.msra.mxu0 0
        %210 = vmatpush.bf16.xpose.msra.mxu0 0
        %211 = vmatpush.bf16.xpose.msra.mxu0 0
        %212 = vmatpush.bf16.xpose.msra.mxu0 0
        %213 = vmatpush.bf16.xpose.msra.mxu0 %v189
        %214 = vmatmul.bf16.gmra.mxu0 %v189
        %v215 = vpop.f32.mrf.mxu0
        %v216 = vadd.f32 %v202, %v215
        %v217 = vpop.f32.mrf.mxu0
        %v218 = vadd.f32 %v204, %v217
        %219 = vdwg.mxu0
        %v220 = vadd.f32 %v180, %v216
        %v221 = vadd.f32 %v181, %v218
        %vm222 = vcmask 130048
        %223 = vst.msk [vmem:[#allocation2] sm:$0xff] %vm222, %v220
        %224 = vst.msk [vmem:[#allocation2 + $0x8] sm:$0xff] %vm222, %v221
        %p225 = scmp.eq.s32.totalorder %s18, 3
        // Predicated region
        $region41: #{tpu_custom_call.1} parent=27 // pred_check
          %p226 = pneg %p225
        $region42: #{tpu_custom_call.1} parent=27 // pred_check_branch
          %228 = sbr.rel (%p226) target = $region44
        $region43: #{tpu_custom_call.1} parent=27 // pred_region
          %v229 = vld [vmem:[#allocation2] sm:$0xff]
          %v230 = vld [vmem:[#allocation2 + $0x8] sm:$0xff]
          %v231 = vlaneseq
          %v232 = vshrl.u32 %v231, 7
          %v233 = vadd.s32 %v232, 8
          %v234 = vlaneseq
          %v235 = vand.u32 %v234, 127
          %vm236 = vcmp.eq.s32.totalorder %v232, %v235
          %vm237 = vcmp.eq.s32.totalorder %v233, %v235
          %v238 = vsel %vm236, 1, 0
          %v239 = vsel %vm237, 1, 0
          %v240 = vcvt.s32.f32 %v238
          %v241 = vcvt.s32.f32 %v239
          %v242 = vmul.f32 %v229, %v240
          %v243 = vmul.f32 %v230, %v241
          %v244 = vsel %vm222, %v242, 0.0
          %245 = vadd.xlane.f32.xlu0 %v244
          %v246 = vpop.xlane.xlu0 %245
          %v247 = vsel %vm222, %v243, 0.0
          %248 = vadd.xlane.f32.xlu0 %v247
          %v249 = vpop.xlane.xlu0 %248
          %v250 = vadd.f32 %v244, %v247
          %v251 = vrot.slane %v250, 4
          %v252 = vadd.f32 %v250, %v251
          %v253 = vrot.slane %v252, 2
          %v254 = vadd.f32 %v252, %v253
          %v255 = vrot.slane %v254, 1
          %v256 = vadd.f32 %v254, %v255
          %v257 = vadd.f32 %v246, %v256
          %v258 = vadd.f32 %v249, %v256
          %v259 = vmul.f32 %v229, 2.0
          %v260 = vmul.f32 %v230, 2.0
          %v261 = vsub.f32 %v257, %v259
          %v262 = vsub.f32 %v258, %v260
          %v263 = vmax.f32 %v261, 1e-12
          %v264 = vmax.f32 %v262, 1e-12
          %266 = vrot.lane.b32.xlu0 %v263, 120
          %v267 = vpop.permute.xlu0 %266
          %vm269 = vcmask 64512
          %v270 = vsel %vm269, %v267, 0.0
          %271 = vadd.xlane.f32.xlu0 %v270
          %v272 = vpop.xlane.xlu0 %271
          %v273 = vrot.slane %v272, 4
          %v274 = vadd.f32 %v272, %v273
          %v275 = vrot.slane %v274, 2
          %v276 = vadd.f32 %v274, %v275
          %v277 = vrot.slane %v276, 1
          %v278 = vadd.f32 %v276, %v277
          %s279 = vtos %v278
          %v280 = vrcp.pop 64.0
          %v281 = vmul.f32 64.0, %v280
          %v282 = vsub.f32 1.0, %v281
          %v283 = vmul.f32 %v280, %v282
          %v284 = vadd.f32 %v280, %v283
          %vm285 = vweird.f32 %v280
          %v286 = vsel %vm285, %v280, %v284
          %s287 = vtos %v286
          %s288 = smul.f32 %s279, %s287
          %s289 = smul.f32 %s288, 2.0
          %v290 = vstv %s289
          %v291 = vrcp.pop %v290
          %v292 = vmul.f32 %v290, %v291
          %v293 = vsub.f32 1.0, %v292
          %v294 = vmul.f32 %v291, %v293
          %v295 = vadd.f32 %v291, %v294
          %vm296 = vweird.f32 %v290
          %vm297 = vweird.f32 %v291
          %vm298 = vmor %vm296, %vm297
          %v299 = vsel %vm298, %v291, %v295
          %v300 = vand.u32 2147483647, %v290
          %vm301 = vcmp.eq.f32.partialorder %v300, 8.507059e+37
          %v302 = vand.u32 %v290, 2147483648
          %v303 = vor.u32 1.1754944e-38, %v302
          %v304 = vsel %vm301, %v303, %v299
          %s305 = vtos %v304
          %v306 = vsub.f32 0.0, %v263
          %v307 = vsub.f32 0.0, %v264
          %v308 = vstv %s305
          %v309 = vmul.f32 %v306, %v308
          %v310 = vmul.f32 %v307, %v308
          %v311 = vmul.f32 %v309, 1.442695
          %v312 = vpow.pop %v311
          %v313 = vmul.f32 %v310, 1.442695
          %v314 = vpow.pop %v313
          %v315 = vld [vmem:[#allocation3] sm:$0x3]
          %v316 = vmul.u32 %v315, 2
          %v317 = vperm.slane %v316, 0
          %v318 = vsub.s32 %v232, %v317
          %vm319 = vcmp.ge.s32.totalorder %v318, 0
          %vm320 = vcmp.lt.s32.totalorder %v318, 2
          %vm321 = vmand %vm319, %vm320
          %v322 = vsel %vm321, 1, 0
          %v323 = vcvt.s32.f32 %v322
          %v324 = vperm.slane %v315, 1
          %vm325 = vcmp.eq.s32.totalorder %v318, %v324
          %vm326 = vmand %vm321, %vm325
          %v327 = vsel %vm326, 1, 0
          %v328 = vcvt.s32.f32 %v327
          %vm329 = vcmask 60416
          %v330 = vsel %vm329, %v323, 0.0
          %331 = vadd.xlane.f32.xlu0 %v330
          %v332 = vpop.xlane.xlu0 %331
          %v333 = vsel %vm329, %v328, 0.0
          %334 = vadd.xlane.f32.xlu0 %v333
          %v335 = vpop.xlane.xlu0 %334
          %v337 = vsel %vm269, %v323, 0
          %339 = vmatpush.msra.mxu0 0.0
          %340 = vmatpush.msra.mxu0 0.0
          %341 = vmatpush.msra.mxu0 0.0
          %342 = vmatpush.msra.mxu0 0.0
          %343 = vmatpush.msra.mxu0 0.0
          %344 = vmatpush.msra.mxu0 0.0
          %345 = vmatpush.msra.mxu0 0.0
          %346 = vmatpush.msra.mxu0 0.0
          %347 = vmatpush.msra.mxu0 0.0
          %348 = vmatpush.msra.mxu0 0.0
          %349 = vmatpush.msra.mxu0 0.0
          %350 = vmatpush.msra.mxu0 0.0
          %351 = vmatpush.msra.mxu0 0.0
          %352 = vmatpush.msra.mxu0 0.0
          %353 = vmatpush.msra.mxu0 0.0
          %354 = vmatpush.msra.mxu0 %v312
          %355 = vmatmul.f32.gmra.mxu0 %v337
          %v356 = vpop.f32.mrf.mxu0
          %v357 = vadd.f32 0.0, %v356
          %358 = vdwg.mxu0
          %v359 = vmul.f32 %v357, %v323
          %v360 = vsel %vm329, %v359, 0.0
          %361 = vadd.xlane.f32.xlu0 %v360
          %v362 = vpop.xlane.xlu0 %361
          %364 = vrot.lane.b32.xlu0 %v314, 120
          %v365 = vpop.permute.xlu0 %364
          %v368 = vsel %vm269, %v328, 0
          %370 = vmatpush.msra.mxu0 0.0
          %371 = vmatpush.msra.mxu0 0.0
          %372 = vmatpush.msra.mxu0 0.0
          %373 = vmatpush.msra.mxu0 0.0
          %374 = vmatpush.msra.mxu0 0.0
          %375 = vmatpush.msra.mxu0 0.0
          %376 = vmatpush.msra.mxu0 0.0
          %377 = vmatpush.msra.mxu0 0.0
          %378 = vmatpush.msra.mxu0 0.0
          %379 = vmatpush.msra.mxu0 0.0
          %380 = vmatpush.msra.mxu0 0.0
          %381 = vmatpush.msra.mxu0 0.0
          %382 = vmatpush.msra.mxu0 0.0
          %383 = vmatpush.msra.mxu0 0.0
          %384 = vmatpush.msra.mxu0 0.0
          %385 = vmatpush.msra.mxu0 %v365
          %386 = vmatmul.f32.gmra.mxu0 %v368
          %v387 = vpop.f32.mrf.mxu0
          %v388 = vadd.f32 0.0, %v387
          %389 = vdwg.mxu0
          %v390 = vmul.f32 %v388, %v328
          %v391 = vsel %vm329, %v390, 0.0
          %392 = vadd.xlane.f32.xlu0 %v391
          %v393 = vpop.xlane.xlu0 %392
          %395 = vrot.lane.b32.xlu0 %v312, 120
          %v396 = vpop.permute.xlu0 %395
          %398 = vmatpush.msra.mxu0 0.0
          %399 = vmatpush.msra.mxu0 0.0
          %400 = vmatpush.msra.mxu0 0.0
          %401 = vmatpush.msra.mxu0 0.0
          %402 = vmatpush.msra.mxu0 0.0
          %403 = vmatpush.msra.mxu0 0.0
          %404 = vmatpush.msra.mxu0 0.0
          %405 = vmatpush.msra.mxu0 0.0
          %406 = vmatpush.msra.mxu0 0.0
          %407 = vmatpush.msra.mxu0 0.0
          %408 = vmatpush.msra.mxu0 0.0
          %409 = vmatpush.msra.mxu0 0.0
          %410 = vmatpush.msra.mxu0 0.0
          %411 = vmatpush.msra.mxu0 0.0
          %412 = vmatpush.msra.mxu0 0.0
          %413 = vmatpush.msra.mxu0 %v396
          %414 = vmatmul.f32.gmra.mxu0 %v337
          %v415 = vpop.f32.mrf.mxu0
          %v416 = vadd.f32 0.0, %v415
          %417 = vdwg.mxu0
          %v418 = vmul.f32 %v416, %v328
          %v419 = vsel %vm329, %v418, 0.0
          %420 = vadd.xlane.f32.xlu0 %v419
          %v421 = vpop.xlane.xlu0 %420
          %v422 = vmul.f32 %v332, %v332
          %v423 = vmax.f32 %v422, 1.0
          %v424 = vrcp.pop %v423
          %v425 = vmul.f32 %v423, %v424
          %v426 = vsub.f32 1.0, %v425
          %v427 = vmul.f32 %v424, %v426
          %v428 = vadd.f32 %v424, %v427
          %vm429 = vweird.f32 %v423
          %vm430 = vweird.f32 %v424
          %vm431 = vmor %vm429, %vm430
          %v432 = vsel %vm431, %v424, %v428
          %v433 = vand.u32 2147483647, %v423
          %vm434 = vcmp.eq.f32.partialorder %v433, 8.507059e+37
          %v435 = vand.u32 %v423, 2147483648
          %v436 = vor.u32 1.1754944e-38, %v435
          %v437 = vsel %vm434, %v436, %v432
          %v438 = vmul.f32 %v362, %v437
          %v439 = vmul.f32 %v335, %v335
          %v440 = vmax.f32 %v439, 1.0
          %v441 = vrcp.pop %v440
          %v442 = vmul.f32 %v440, %v441
          %v443 = vsub.f32 1.0, %v442
          %v444 = vmul.f32 %v441, %v443
          %v445 = vadd.f32 %v441, %v444
          %vm446 = vweird.f32 %v440
          %vm447 = vweird.f32 %v441
          %vm448 = vmor %vm446, %vm447
          %v449 = vsel %vm448, %v441, %v445
          %v450 = vand.u32 2147483647, %v440
          %vm451 = vcmp.eq.f32.partialorder %v450, 8.507059e+37
          %v452 = vand.u32 %v440, 2147483648
          %v453 = vor.u32 1.1754944e-38, %v452
          %v454 = vsel %vm451, %v453, %v449
          %v455 = vmul.f32 %v393, %v454
          %v456 = vmul.f32 %v332, %v335
          %v457 = vmax.f32 %v456, 1.0
          %v458 = vrcp.pop %v457
          %v459 = vmul.f32 %v457, %v458
          %v460 = vsub.f32 1.0, %v459
          %v461 = vmul.f32 %v458, %v460
          %v462 = vadd.f32 %v458, %v461
          %vm463 = vweird.f32 %v457
          %vm464 = vweird.f32 %v458
          %vm465 = vmor %vm463, %vm464
          %v466 = vsel %vm465, %v458, %v462
          %v467 = vand.u32 2147483647, %v457
          %vm468 = vcmp.eq.f32.partialorder %v467, 8.507059e+37
          %v469 = vand.u32 %v457, 2147483648
          %v470 = vor.u32 1.1754944e-38, %v469
          %v471 = vsel %vm468, %v470, %v466
          %v472 = vmul.f32 %v421, %v471
          %vm473 = vcmp.gt.f32.partialorder %v332, 0.0
          %vm474 = vcmp.gt.f32.partialorder %v335, 0.0
          %vm475 = vmand %vm473, %vm474
          %v476 = vsel %vm475, 1, 0
          %v477 = vcvt.s32.f32 %v476
          %v478 = vadd.f32 %v438, %v455
          %v479 = vmul.f32 %v472, 2.0
          %v480 = vsub.f32 %v478, %v479
          %v481 = vmul.f32 %v477, %v480
          %vm482 = vcmask 3072
          %v483 = vsel %vm482, %v481, 0.0
          %484 = vadd.xlane.f32.xlu0 %v483
          %v485 = vpop.xlane.xlu0 %484
          %v486 = vrot.slane %v485, 4
          %v487 = vadd.f32 %v485, %v486
          %v488 = vrot.slane %v487, 2
          %v489 = vadd.f32 %v487, %v488
          %v490 = vrot.slane %v489, 1
          %v491 = vadd.f32 %v489, %v490
          %s492 = vtos %v491
          %s493 = smul.f32 %s492, 0.5
          %s494 = scalar_lea.smem [#allocation8], 0
          %495 = sst [smem:[%s494]] %s493
        $region44: #{tpu_custom_call.1} parent=27 // pred_fallthru
          _
        // Predicated region
        $region45: #{tpu_custom_call.1} parent=27 // pred_check
          %p496 = pneg %p78
        $region46: #{tpu_custom_call.1} parent=27 // pred_check_branch
          %498 = sbr.rel (%p496) target = $region48
        $region47: #{tpu_custom_call.1} parent=27 // pred_region
          %500 = vsyncadd [#allocation5], 0
          %s502 = sshll.u32 %s2, 4
          %s503 = int_to_ptr.hbm [resolvable:$true] %s502
          %505 = dma.smem_to_hbm [#allocation8], 16, %s503, [#allocation5]
        $region48: #{tpu_custom_call.1} parent=27 // pred_fallthru
          _
        // Predicated region
        $region49: #{tpu_custom_call.1} parent=27 // pred_check
          %p506 = pneg %p78
        $region50: #{tpu_custom_call.1} parent=27 // pred_check_branch
          %508 = sbr.rel (%p506) target = $region52
        $region51: #{tpu_custom_call.1} parent=27 // pred_region
          %510 = dma.done [#allocation5], 16
        $region52: #{tpu_custom_call.1} parent=27 // pred_fallthru
          _
        %511 = sfence
      $region28: #{tpu_custom_call.1} parent=5 // pred_fallthru
        _
      %p512 = scmp.le.s32.totalorder 2, %s13
      // Predicated region
      $region53: #{tpu_custom_call.1} parent=5 // pred_check
        %p513 = pneg %p512
      $region54: #{tpu_custom_call.1} parent=5 // pred_check_branch
        %515 = sbr.rel (%p513) target = $region56
      $region55: #{tpu_custom_call.1} parent=5 // pred_region
        %s516 = ssub.s32 %s13, 2
      $region56: #{tpu_custom_call.1} parent=5 // pred_fallthru
        _
    $region6: #{tpu_custom_call.1} parent=1 // loop_footer
      %s17 = sadd.s32 1, %s13
    $region7: #{tpu_custom_call.1} parent=1 // loop_footer_branch
      %12 = sbr.rel target = $region3
    $region8: #{tpu_custom_call.1} parent=1 // loop_exit
      _
    %517 = vsyncpa [#allocation4], 1
    %s518 = scalar_lea.sflag [#allocation4], 1
    %519 = vsyncpa %s518, 1
    %520 = vsyncpa [#allocation7], 1
    %s521 = scalar_lea.sflag [#allocation7], 1
    %522 = vsyncpa %s521, 1
    %523 = vsyncpa [#allocation5], 1
    %s524 = scalar_lea.sflag [#allocation5], 1
    %525 = vsyncpa %s524, 1

</llo_original>
